<compile_context>
chip_gen: v5e
topology: v5e:2x2
jax: 0.10.0
libtpu: 0.0.40
codegen_flags: <defaults>
</compile_context>

<pallas_src>
import jax
import jax.numpy as jnp
from jax.experimental import pallas as pl
from jax.experimental.pallas import tpu as pltpu

_LANES = 128      # lane-packed hidden/output width: exactly one f32 vreg wide
_BIAS_ROWS = 8    # bias slab sublane count: exactly one f32 vreg tall


def _relevance_kernel(img_ref, txt_ref, w_ref, b_ref, out_ref):
    """Fused 3-layer MLP; all three heads ride one block-diagonal weight slab.

    w_ref row layout:
      [0,      H)        layer-1 rows fed by img_feat
      [H,      2H)       layer-1 rows fed by text_feat
      [2H,     2H+128)   layer-2 block-diagonal weights (lane/row padded)
      [2H+128, 2H+256)   layer-3 weights (heads land in lanes 0..2)
    b_ref rows 0/1/2 hold the packed layer-1/2/3 biases (f32); rest is zero.
    """
    H = img_ref.shape[1]
    cdt = w_ref.dtype  # matmul-operand dtype (bf16 fast path or f32)

    w1_img = w_ref[0:H, :]
    w1_txt = w_ref[H:2 * H, :]
    w2 = w_ref[2 * H:2 * H + _LANES, :]
    w3 = w_ref[2 * H + _LANES:2 * H + 2 * _LANES, :]

    b1 = b_ref[0:1, :]
    b2 = b_ref[1:2, :]
    b3 = b_ref[2:3, :]

    # Layer 1: concat([img, text]) @ W1 expressed as two row-sliced matmuls
    # (no concatenate anywhere). Accumulate and keep the epilogue in f32.
    h = (jnp.dot(img_ref[...].astype(cdt), w1_img, preferred_element_type=jnp.float32)
         + jnp.dot(txt_ref[...].astype(cdt), w1_txt, preferred_element_type=jnp.float32)
         + b1)
    h = jnp.maximum(h, 0.0)

    # Layer 2: block-diagonal, lane-padded to 128; padding stays exactly 0.
    h = jnp.maximum(
        jnp.dot(h.astype(cdt), w2, preferred_element_type=jnp.float32) + b2, 0.0)

    # Layer 3 + sigmoid. Meaningful results sit in lanes 0..2; the remaining
    # lanes are sigmoid(0)=0.5 padding that is never read. Single unmasked
    # (B, 128) store.
    out_ref[...] = jax.nn.sigmoid(
        jnp.dot(h.astype(cdt), w3, preferred_element_type=jnp.float32) + b3)


def init_params(key, hidden_size):
    """Deterministic synthetic parameters matching the PyTorch module's shapes."""
    h = hidden_size
    h2, h4 = h // 2, h // 4

    def linear(key, fan_in, fan_out):
        kw, kb = jax.random.split(key)
        bound = 1.0 / (fan_in ** 0.5)
        w = jax.random.uniform(kw, (fan_in, fan_out), jnp.float32, -bound, bound)
        b = jax.random.uniform(kb, (1, fan_out), jnp.float32, -bound, bound)
        return w, b

    keys = jax.random.split(key, 9)
    params = {}
    # img_relevance_net: H -> H/2 -> H/4 -> 1
    params["iw1"], params["ib1"] = linear(keys[0], h, h2)
    params["iw2"], params["ib2"] = linear(keys[1], h2, h4)
    params["iw3"], params["ib3"] = linear(keys[2], h4, 1)
    # text_relevance_net: H -> H/2 -> H/4 -> 1
    params["tw1"], params["tb1"] = linear(keys[3], h, h2)
    params["tw2"], params["tb2"] = linear(keys[4], h2, h4)
    params["tw3"], params["tb3"] = linear(keys[5], h4, 1)
    # synergy_net: 2H -> H -> H/2 -> 1
    params["sw1"], params["sb1"] = linear(keys[6], 2 * h, h)
    params["sw2"], params["sb2"] = linear(keys[7], h, h2)
    params["sw3"], params["sb3"] = linear(keys[8], h2, 1)
    return params


def pack_params(params, hidden_size, compute_dtype=jnp.bfloat16):
    """Pack all 9 Linear layers into ONE weight slab + ONE bias slab.

    Done once on the host. All padding entries are exactly zero, so the
    block-diagonal packing reproduces the per-head computation bit-for-bit
    (up to compute_dtype rounding of the matmul operands).
    """
    h = hidden_size
    h2, h4 = h // 2, h // 4
    assert 2 * h <= _LANES, "H > 64 needs the K-tiled scale-up path (see TODO)"

    # ---- layer 1: (2H, 128). Rows: [img | text] features. Cols: packed heads.
    w1 = jnp.zeros((2 * h, _LANES), jnp.float32)
    w1 = w1.at[:h, :h2].set(params["iw1"])
    w1 = w1.at[h:, h2:2 * h2].set(params["tw1"])
    w1 = w1.at[:, 2 * h2:2 * h2 + h].set(params["sw1"])
    b1 = jnp.zeros((1, _LANES), jnp.float32)
    b1 = b1.at[:, :h2].set(params["ib1"])
    b1 = b1.at[:, h2:2 * h2].set(params["tb1"])
    b1 = b1.at[:, 2 * h2:2 * h2 + h].set(params["sb1"])

    # ---- layer 2: (128, 128) block-diagonal; unused rows/cols stay zero.
    w2 = jnp.zeros((_LANES, _LANES), jnp.float32)
    w2 = w2.at[:h2, :h4].set(params["iw2"])
    w2 = w2.at[h2:2 * h2, h4:2 * h4].set(params["tw2"])
    w2 = w2.at[2 * h2:2 * h2 + h, 2 * h4:2 * h4 + h2].set(params["sw2"])
    b2 = jnp.zeros((1, _LANES), jnp.float32)
    b2 = b2.at[:, :h4].set(params["ib2"])
    b2 = b2.at[:, h4:2 * h4].set(params["tb2"])
    b2 = b2.at[:, 2 * h4:2 * h4 + h2].set(params["sb2"])

    # ---- layer 3: (128, 128); the three (., 1) heads land in lanes 0..2.
    w3 = jnp.zeros((_LANES, _LANES), jnp.float32)
    w3 = w3.at[:h4, 0:1].set(params["iw3"])
    w3 = w3.at[h4:2 * h4, 1:2].set(params["tw3"])
    w3 = w3.at[2 * h4:2 * h4 + h2, 2:3].set(params["sw3"])
    b3 = jnp.zeros((1, _LANES), jnp.float32)
    b3 = b3.at[:, 0:1].set(params["ib3"])
    b3 = b3.at[:, 1:2].set(params["tb3"])
    b3 = b3.at[:, 2:3].set(params["sb3"])

    # Single weight slab (matmul operands -> compute_dtype) + single f32 bias slab.
    w = jnp.concatenate([w1, w2, w3], axis=0).astype(compute_dtype)  # (2H+256, 128)
    b = jnp.zeros((_BIAS_ROWS, _LANES), jnp.float32)
    b = b.at[0:1, :].set(b1)
    b = b.at[1:2, :].set(b2)
    b = b.at[2:3, :].set(b3)
    return {"w": w, "b": b}


def task_relevance_predictor_packed(img_feat, text_feat, packed):
    """Run the fused kernel; returns the lane-packed (B, 128) result slab
    (lane 0 = img relevance, lane 1 = text relevance, lane 2 = synergy)."""
    B, H = img_feat.shape
    w, b = packed["w"], packed["b"]
    assert w.shape == (2 * H + 2 * _LANES, _LANES)
    assert b.shape == (_BIAS_ROWS, _LANES)

    flops = 4 * B * H * _LANES + 4 * B * _LANES * _LANES
    transcendentals = B * _LANES  # one exp per sigmoid output element (incl. padding)
    bytes_accessed = (img_feat.size * img_feat.dtype.itemsize
                      + text_feat.size * text_feat.dtype.itemsize
                      + w.size * w.dtype.itemsize
                      + b.size * b.dtype.itemsize
                      + B * _LANES * 4)

    vmem = pl.BlockSpec(memory_space=pltpu.MemorySpace.VMEM)
    return pl.pallas_call(
        _relevance_kernel,
        out_shape=jax.ShapeDtypeStruct((B, _LANES), jnp.float32),
        in_specs=[vmem, vmem, vmem, vmem],
        out_specs=vmem,
        cost_estimate=pl.CostEstimate(
            flops=flops,
            transcendentals=transcendentals,
            bytes_accessed=bytes_accessed,
        ),
    )(img_feat, text_feat, w, b)


def task_relevance_predictor(img_feat, text_feat, packed):
    """PyTorch-parity API: dict of three (B,) arrays."""
    out = task_relevance_predictor_packed(img_feat, text_feat, packed)
    res = out[:, :3]  # single host-side slice of the packed slab
    return {
        "img_task_relevance": res[:, 0],
        "text_task_relevance": res[:, 1],
        "cross_modal_synergy": res[:, 2],
    }


def _reference(img_feat, text_feat, params):
    """Pure-JAX reference (un-packed f32 weights) for correctness check."""
    def head(x, w1, b1, w2, b2, w3, b3):
        h = jnp.maximum(x @ w1 + b1, 0.0)
        h = jnp.maximum(h @ w2 + b2, 0.0)
        return jax.nn.sigmoid(h @ w3 + b3)

    p = params
    img = head(img_feat, p["iw1"], p["ib1"], p["iw2"], p["ib2"], p["iw3"], p["ib3"])
    txt = head(text_feat, p["tw1"], p["tb1"], p["tw2"], p["tb2"], p["tw3"], p["tb3"])
    comb = jnp.concatenate([img_feat, text_feat], axis=-1)
    syn = head(comb, p["sw1"], p["sb1"], p["sw2"], p["sb2"], p["sw3"], p["sb3"])
    return {
        "img_task_relevance": jnp.squeeze(img, -1),
        "text_task_relevance": jnp.squeeze(txt, -1),
        "cross_modal_synergy": jnp.squeeze(syn, -1),
    }


if __name__ == "__main__":
    key = jax.random.PRNGKey(0)
    k_params, k_img, k_txt = jax.random.split(key, 3)

    B, H = 8, 32  # small shapes consistent with the module (B mult of 8)
    params = init_params(k_params, H)
    img_feat = jax.random.normal(k_img, (B, H), jnp.float32)
    text_feat = jax.random.normal(k_txt, (B, H), jnp.float32)

    ref = _reference(img_feat, text_feat, params)
    names = ("img_task_relevance", "text_task_relevance", "cross_modal_synergy")

    # f32 matmul operands: exact check against the f32 reference.
    packed_f32 = pack_params(params, H, compute_dtype=jnp.float32)
    out_f32 = task_relevance_predictor(img_feat, text_feat, packed_f32)
    out_f32 = jax.tree_util.tree_map(jax.block_until_ready, out_f32)
    for name in names:
        assert out_f32[name].shape == (B,), f"{name} has shape {out_f32[name].shape}"
        assert jnp.allclose(out_f32[name], ref[name], atol=1e-5, rtol=1e-5), f"{name} mismatch (f32)"

    # bf16 matmul operands (v6e/v7x MXU fast path; f32 epilogue): loose check.
    packed_bf16 = pack_params(params, H, compute_dtype=jnp.bfloat16)
    out_bf16 = task_relevance_predictor(img_feat, text_feat, packed_bf16)
    out_bf16 = jax.tree_util.tree_map(jax.block_until_ready, out_bf16)
    for name in names:
        assert out_bf16[name].shape == (B,), f"{name} has shape {out_bf16[name].shape}"
        assert jnp.allclose(out_bf16[name], ref[name], atol=3e-2, rtol=3e-2), f"{name} mismatch (bf16)"

    print("KERNEL_OK")
</pallas_src>

<mosaic_0001>
module attributes {stable_mosaic.version = 11 : i64} {
  func.func @_relevance_kernel(%arg0: memref<8x32xf32, #tpu.memory_space<vmem>>, %arg1: memref<8x32xf32, #tpu.memory_space<vmem>>, %arg2: memref<320x128xf32, #tpu.memory_space<vmem>>, %arg3: memref<8x128xf32, #tpu.memory_space<vmem>>, %arg4: memref<8x128xf32, #tpu.memory_space<vmem>>) attributes {dimension_semantics = [], scalar_prefetch = 0 : i64, scratch_operands = 0 : i64, tpu.core_type = #tpu.core_type<tc>} {
    %c0 = arith.constant 0 : index
    %c0_0 = arith.constant 0 : index
    %0 = vector.load %arg2[%c0, %c0_0] : memref<320x128xf32, #tpu.memory_space<vmem>>, vector<32x128xf32>
    %c32 = arith.constant 32 : index
    %c0_1 = arith.constant 0 : index
    %1 = vector.load %arg2[%c32, %c0_1] : memref<320x128xf32, #tpu.memory_space<vmem>>, vector<32x128xf32>
    %c64 = arith.constant 64 : index
    %c0_2 = arith.constant 0 : index
    %2 = vector.load %arg2[%c64, %c0_2] : memref<320x128xf32, #tpu.memory_space<vmem>>, vector<128x128xf32>
    %c192 = arith.constant 192 : index
    %c0_3 = arith.constant 0 : index
    %3 = vector.load %arg2[%c192, %c0_3] : memref<320x128xf32, #tpu.memory_space<vmem>>, vector<128x128xf32>
    %c0_4 = arith.constant 0 : index
    %c0_5 = arith.constant 0 : index
    %4 = vector.load %arg3[%c0_4, %c0_5] : memref<8x128xf32, #tpu.memory_space<vmem>>, vector<1x128xf32>
    %c1 = arith.constant 1 : index
    %c0_6 = arith.constant 0 : index
    %5 = vector.load %arg3[%c1, %c0_6] : memref<8x128xf32, #tpu.memory_space<vmem>>, vector<1x128xf32>
    %c2 = arith.constant 2 : index
    %c0_7 = arith.constant 0 : index
    %6 = vector.load %arg3[%c2, %c0_7] : memref<8x128xf32, #tpu.memory_space<vmem>>, vector<1x128xf32>
    %c0_8 = arith.constant 0 : index
    %c0_9 = arith.constant 0 : index
    %7 = vector.load %arg0[%c0_8, %c0_9] : memref<8x32xf32, #tpu.memory_space<vmem>>, vector<8x32xf32>
    %cst = arith.constant dense<0.000000e+00> : vector<8x128xf32>
    %8 = tpu.matmul %7, %0, %cst {dimension_numbers = #tpu.dot_dimension_numbers<[1], [0], [0], [1], [0, 0, 1, 1], [], []>} : vector<8x32xf32>, vector<32x128xf32>, vector<8x128xf32> -> vector<8x128xf32>
    %c0_10 = arith.constant 0 : index
    %c0_11 = arith.constant 0 : index
    %9 = vector.load %arg1[%c0_10, %c0_11] : memref<8x32xf32, #tpu.memory_space<vmem>>, vector<8x32xf32>
    %cst_12 = arith.constant dense<0.000000e+00> : vector<8x128xf32>
    %10 = tpu.matmul %9, %1, %cst_12 {dimension_numbers = #tpu.dot_dimension_numbers<[1], [0], [0], [1], [0, 0, 1, 1], [], []>} : vector<8x32xf32>, vector<32x128xf32>, vector<8x128xf32> -> vector<8x128xf32>
    %11 = arith.addf %8, %10 : vector<8x128xf32>
    %12 = vector.broadcast %4 : vector<1x128xf32> to vector<8x128xf32>
    %13 = arith.addf %11, %12 : vector<8x128xf32>
    %cst_13 = arith.constant 0.000000e+00 : f32
    %14 = vector.broadcast %cst_13 : f32 to vector<8x128xf32>
    %15 = arith.maximumf %13, %14 : vector<8x128xf32>
    %cst_14 = arith.constant dense<0.000000e+00> : vector<8x128xf32>
    %16 = tpu.matmul %15, %2, %cst_14 {dimension_numbers = #tpu.dot_dimension_numbers<[1], [0], [0], [1], [0, 0, 1, 1], [], []>} : vector<8x128xf32>, vector<128x128xf32>, vector<8x128xf32> -> vector<8x128xf32>
    %17 = vector.broadcast %5 : vector<1x128xf32> to vector<8x128xf32>
    %18 = arith.addf %16, %17 : vector<8x128xf32>
    %cst_15 = arith.constant 0.000000e+00 : f32
    %19 = vector.broadcast %cst_15 : f32 to vector<8x128xf32>
    %20 = arith.maximumf %18, %19 : vector<8x128xf32>
    %cst_16 = arith.constant dense<0.000000e+00> : vector<8x128xf32>
    %21 = tpu.matmul %20, %3, %cst_16 {dimension_numbers = #tpu.dot_dimension_numbers<[1], [0], [0], [1], [0, 0, 1, 1], [], []>} : vector<8x128xf32>, vector<128x128xf32>, vector<8x128xf32> -> vector<8x128xf32>
    %22 = vector.broadcast %6 : vector<1x128xf32> to vector<8x128xf32>
    %23 = arith.addf %21, %22 : vector<8x128xf32>
    %24 = arith.negf %23 : vector<8x128xf32>
    %25 = math.exp %24 : vector<8x128xf32>
    %cst_17 = arith.constant 1.000000e+00 : f32
    %26 = vector.broadcast %cst_17 : f32 to vector<8x128xf32>
    %27 = arith.addf %26, %25 : vector<8x128xf32>
    %28 = arith.divf %26, %27 : vector<8x128xf32>
    %c0_18 = arith.constant 0 : index
    %c0_19 = arith.constant 0 : index
    %29 = vector.load %arg4[%c0_18, %c0_19] : memref<8x128xf32, #tpu.memory_space<vmem>>, vector<8x128xf32>
    tpu.vector_store %arg4[%c0_18, %c0_19], %28 {strides = array<i32>} : memref<8x128xf32, #tpu.memory_space<vmem>>, vector<8x128xf32>,
    return
  }
}

</mosaic_0001>

<llo_original>
// kernel: tpu_custom_call.1
$region0: #{tpu_custom_call.1}
  #allocation0 [shape = 'u32[]', space=smem, size = 0x4, offset = 0x4, fixed_abs, tag = 'smem constant byte address 0x4 - core index']
  #allocation1 [shape = 'u32[72,128]{1,0:T(1,128)}', space=vmem, size = 0x9000, scoped, tag = 'internal scratch']
  %s0 = inlined_call_operand.hbm [shape: f32[8,32], index: 0, kind: input, shape index: {}]
  %s1 = inlined_call_operand.hbm [shape: f32[8,32], index: 1, kind: input, shape index: {}]
  %s2 = inlined_call_operand.hbm [shape: f32[320,128], index: 2, kind: input, shape index: {}]
  %s3 = inlined_call_operand.hbm [shape: f32[8,128], index: 3, kind: input, shape index: {}]
  %s4 = inlined_call_operand.hbm [shape: f32[8,128], index: 4, kind: output, shape index: {}]
  %s5 = sld [smem:[#allocation0]]
  $region42: #{tpu_custom_call.1} parent=0
    _
  %s7 = ssub.s32 1, %s5
  %s8 = scalar_select 0, %s7, %s5
  $region1: #{tpu_custom_call.1} parent=0
    #allocation2 [shape = 'u8[4096]{0}', space=vmem, size = 0x1000, scoped, tag = 'input window, operand 0, single buffered']
    #allocation3 [shape = 's32[1]{0}', space=sflag, size = 0x4, scoped, tag = 'scoped memory for tpu_custom_call.1']
    #allocation4 [shape = 's32[1]{0}', space=sflag, size = 0x4, scoped, tag = 'scoped memory for tpu_custom_call.1']
    #allocation5 [shape = 'u8[4096]{0}', space=vmem, size = 0x1000, scoped, tag = 'input window, operand 1, single buffered']
    #allocation6 [shape = 's32[1]{0}', space=sflag, size = 0x4, scoped, tag = 'scoped memory for tpu_custom_call.1']
    #allocation7 [shape = 'u8[163840]{0}', space=vmem, size = 0x28000, scoped, tag = 'input window, operand 2, single buffered']
    #allocation8 [shape = 'u8[4096]{0}', space=vmem, size = 0x1000, scoped, tag = 'input window, operand 3, single buffered']
    #allocation9 [shape = 's32[1]{0}', space=sflag, size = 0x4, scoped, tag = 'scoped memory for tpu_custom_call.1']
    #allocation10 [shape = 'u8[4096]{0}', space=vmem, size = 0x1000, scoped, tag = 'output window, operand 0, single buffered']
    %9 = vsyncpa [#allocation3], 0
    %10 = vsyncpa [#allocation6], 0
    %11 = vsyncpa [#allocation9], 0
    %12 = vsyncpa [#allocation4], 0
    // Predicated region
    $region2: #{tpu_custom_call.1} parent=1 // pred_check
      _
    $region3: #{tpu_custom_call.1} parent=1 // pred_check_branch
      %14 = sbr.rel (0) target = $region5
    $region4: #{tpu_custom_call.1} parent=1 // pred_region
      %16 = vsyncadd [#allocation3], 0
      %s18 = sshll.u32 %s0, 4
      %s19 = int_to_ptr.hbm [resolvable:$true] %s18
      %s20 = sshll.u32 [#allocation2], 4
      %s21 = int_to_ptr.vmem [resolvable:$true] %s20
      %23 = dma.hbm_to_vmem [thread:$0]  %s19, 128, %s21, [#allocation3]
    $region5: #{tpu_custom_call.1} parent=1 // pred_fallthru
      _
    // Predicated region
    $region6: #{tpu_custom_call.1} parent=1 // pred_check
      _
    $region7: #{tpu_custom_call.1} parent=1 // pred_check_branch
      %25 = sbr.rel (0) target = $region9
    $region8: #{tpu_custom_call.1} parent=1 // pred_region
      %27 = vsyncadd [#allocation6], 0
      %s29 = sshll.u32 %s1, 4
      %s30 = int_to_ptr.hbm [resolvable:$true] %s29
      %s31 = sshll.u32 [#allocation5], 4
      %s32 = int_to_ptr.vmem [resolvable:$true] %s31
      %34 = dma.hbm_to_vmem [thread:$0]  %s30, 128, %s32, [#allocation6]
    $region9: #{tpu_custom_call.1} parent=1 // pred_fallthru
      _
    // Predicated region
    $region10: #{tpu_custom_call.1} parent=1 // pred_check
      _
    $region11: #{tpu_custom_call.1} parent=1 // pred_check_branch
      %36 = sbr.rel (0) target = $region13
    $region12: #{tpu_custom_call.1} parent=1 // pred_region
      %38 = vsyncadd [#allocation6], 0
      %s39 = sshll.u32 %s2, 4
      %s40 = int_to_ptr.hbm [resolvable:$true] %s39
      %s41 = sshll.u32 [#allocation7], 4
      %s42 = int_to_ptr.vmem [resolvable:$true] %s41
      %47 = dma.hbm_to_vmem [thread:$0]  %s40, 5120, %s42, [#allocation6], 128, 128, 8
    $region13: #{tpu_custom_call.1} parent=1 // pred_fallthru
      _
    // Predicated region
    $region14: #{tpu_custom_call.1} parent=1 // pred_check
      _
    $region15: #{tpu_custom_call.1} parent=1 // pred_check_branch
      %49 = sbr.rel (0) target = $region17
    $region16: #{tpu_custom_call.1} parent=1 // pred_region
      %51 = vsyncadd [#allocation9], 0
      %s53 = sshll.u32 %s3, 4
      %s54 = int_to_ptr.hbm [resolvable:$true] %s53
      %s55 = sshll.u32 [#allocation8], 4
      %s56 = int_to_ptr.vmem [resolvable:$true] %s55
      %58 = dma.hbm_to_vmem [thread:$0]  %s54, 128, %s56, [#allocation9]
    $region17: #{tpu_custom_call.1} parent=1 // pred_fallthru
      _
    // Predicated region
    $region18: #{tpu_custom_call.1} parent=1 // pred_check
      _
    $region19: #{tpu_custom_call.1} parent=1 // pred_check_branch
      %60 = sbr.rel (0) target = $region21
    $region20: #{tpu_custom_call.1} parent=1 // pred_region
      %62 = dma.done [#allocation3], 128
    $region21: #{tpu_custom_call.1} parent=1 // pred_fallthru
      _
    // Predicated region
    $region22: #{tpu_custom_call.1} parent=1 // pred_check
      _
    $region23: #{tpu_custom_call.1} parent=1 // pred_check_branch
      %64 = sbr.rel (0) target = $region25
    $region24: #{tpu_custom_call.1} parent=1 // pred_region
      %66 = dma.done [#allocation6], 128
    $region25: #{tpu_custom_call.1} parent=1 // pred_fallthru
      _
    // Predicated region
    $region26: #{tpu_custom_call.1} parent=1 // pred_check
      _
    $region27: #{tpu_custom_call.1} parent=1 // pred_check_branch
      %68 = sbr.rel (0) target = $region29
    $region28: #{tpu_custom_call.1} parent=1 // pred_region
      %70 = dma.done [#allocation6], 5120
    $region29: #{tpu_custom_call.1} parent=1 // pred_fallthru
      _
    // Predicated region
    $region30: #{tpu_custom_call.1} parent=1 // pred_check
      _
    $region31: #{tpu_custom_call.1} parent=1 // pred_check_branch
      %72 = sbr.rel (0) target = $region33
    $region32: #{tpu_custom_call.1} parent=1 // pred_region
      %74 = dma.done [#allocation9], 128
    $region33: #{tpu_custom_call.1} parent=1 // pred_fallthru
      _
    %v75 = vld [vmem:[#allocation7] sm:$0xff]
    %v76 = vld [vmem:[#allocation7 + $0x8] sm:$0xff]
    %v77 = vld [vmem:[#allocation7 + $0x10] sm:$0xff]
    %v78 = vld [vmem:[#allocation7 + $0x18] sm:$0xff]
    %v79 = vld [vmem:[#allocation7 + $0x20] sm:$0xff]
    %v80 = vld [vmem:[#allocation7 + $0x28] sm:$0xff]
    %v81 = vld [vmem:[#allocation7 + $0x30] sm:$0xff]
    %v82 = vld [vmem:[#allocation7 + $0x38] sm:$0xff]
    %v83 = vld [vmem:[#allocation7 + $0x40] sm:$0xff]
    %v84 = vld [vmem:[#allocation7 + $0x48] sm:$0xff]
    %v85 = vld [vmem:[#allocation7 + $0x50] sm:$0xff]
    %v86 = vld [vmem:[#allocation7 + $0x58] sm:$0xff]
    %v87 = vld [vmem:[#allocation7 + $0x60] sm:$0xff]
    %v88 = vld [vmem:[#allocation7 + $0x68] sm:$0xff]
    %v89 = vld [vmem:[#allocation7 + $0x70] sm:$0xff]
    %v90 = vld [vmem:[#allocation7 + $0x78] sm:$0xff]
    %v91 = vld [vmem:[#allocation7 + $0x80] sm:$0xff]
    %v92 = vld [vmem:[#allocation7 + $0x88] sm:$0xff]
    %v93 = vld [vmem:[#allocation7 + $0x90] sm:$0xff]
    %v94 = vld [vmem:[#allocation7 + $0x98] sm:$0xff]
    %v95 = vld [vmem:[#allocation7 + $0xa0] sm:$0xff]
    %v96 = vld [vmem:[#allocation7 + $0xa8] sm:$0xff]
    %v97 = vld [vmem:[#allocation7 + $0xb0] sm:$0xff]
    %v98 = vld [vmem:[#allocation7 + $0xb8] sm:$0xff]
    %v99 = vld [vmem:[#allocation7 + $0xc0] sm:$0xff]
    %v100 = vld [vmem:[#allocation7 + $0xc8] sm:$0xff]
    %v101 = vld [vmem:[#allocation7 + $0xd0] sm:$0xff]
    %v102 = vld [vmem:[#allocation7 + $0xd8] sm:$0xff]
    %v103 = vld [vmem:[#allocation7 + $0xe0] sm:$0xff]
    %v104 = vld [vmem:[#allocation7 + $0xe8] sm:$0xff]
    %v105 = vld [vmem:[#allocation7 + $0xf0] sm:$0xff]
    %v106 = vld [vmem:[#allocation7 + $0xf8] sm:$0xff]
    %v107 = vld [vmem:[#allocation7 + $0x100] sm:$0xff]
    %v108 = vld [vmem:[#allocation7 + $0x108] sm:$0xff]
    %v109 = vld [vmem:[#allocation7 + $0x110] sm:$0xff]
    %v110 = vld [vmem:[#allocation7 + $0x118] sm:$0xff]
    %v111 = vld [vmem:[#allocation7 + $0x120] sm:$0xff]
    %v112 = vld [vmem:[#allocation7 + $0x128] sm:$0xff]
    %v113 = vld [vmem:[#allocation7 + $0x130] sm:$0xff]
    %v114 = vld [vmem:[#allocation7 + $0x138] sm:$0xff]
    %v115 = vld [vmem:[#allocation8] sm:$0x1]
    %v116 = vld [vmem:[#allocation8 + $0x1] sm:$0x1]
    %v117 = vld [vmem:[#allocation8 + $0x2] sm:$0x1]
    %v118 = vld [vmem:[#allocation2] sm:$0xff]
    %v119 = vld [vmem:[#allocation5] sm:$0xff]
    %vm120 = vcmask 261120
    %v122 = vsel %vm120, %v119, 0
    %124 = vmatpush.msra.mxu0 0.0
    %125 = vmatpush.msra.mxu0 0.0
    %126 = vmatpush.msra.mxu0 0.0
    %127 = vmatpush.msra.mxu0 0.0
    %128 = vmatpush.msra.mxu0 0.0
    %129 = vmatpush.msra.mxu0 0.0
    %130 = vmatpush.msra.mxu0 0.0
    %131 = vmatpush.msra.mxu0 0.0
    %132 = vmatpush.msra.mxu0 0.0
    %133 = vmatpush.msra.mxu0 0.0
    %134 = vmatpush.msra.mxu0 0.0
    %135 = vmatpush.msra.mxu0 0.0
    %136 = vmatpush.msra.mxu0 %v82
    %137 = vmatpush.msra.mxu0 %v81
    %138 = vmatpush.msra.mxu0 %v80
    %139 = vmatpush.msra.mxu0 %v79
    %140 = vmatmul.f32.gmra.mxu0 %v122
    %v141 = vpop.f32.mrf.mxu0
    %v142 = vadd.f32 0.0, %v141
    %143 = vdwg.mxu0
    %v145 = vsel %vm120, %v118, 0
    %147 = vmatpush.msra.mxu0 0.0
    %148 = vmatpush.msra.mxu0 0.0
    %149 = vmatpush.msra.mxu0 0.0
    %150 = vmatpush.msra.mxu0 0.0
    %151 = vmatpush.msra.mxu0 0.0
    %152 = vmatpush.msra.mxu0 0.0
    %153 = vmatpush.msra.mxu0 0.0
    %154 = vmatpush.msra.mxu0 0.0
    %155 = vmatpush.msra.mxu0 0.0
    %156 = vmatpush.msra.mxu0 0.0
    %157 = vmatpush.msra.mxu0 0.0
    %158 = vmatpush.msra.mxu0 0.0
    %159 = vmatpush.msra.mxu0 %v78
    %160 = vmatpush.msra.mxu0 %v77
    %161 = vmatpush.msra.mxu0 %v76
    %162 = vmatpush.msra.mxu0 %v75
    %163 = vmatmul.f32.gmra.mxu0 %v145
    %v164 = vpop.f32.mrf.mxu0
    %v165 = vadd.f32 %v142, %v164
    %166 = vdwg.mxu0
    %v167 = vperm.slane %v115, 0
    %v168 = vadd.f32 %v165, %v167
    %v169 = vmax.f32 %v168, 0.0
    %v170 = vperm.slane %v116, 0
    %171 = vmatpush.msra.mxu0 %v98
    %172 = vmatpush.msra.mxu0 %v97
    %173 = vmatpush.msra.mxu0 %v96
    %174 = vmatpush.msra.mxu0 %v95
    %175 = vmatpush.msra.mxu0 %v94
    %176 = vmatpush.msra.mxu0 %v93
    %177 = vmatpush.msra.mxu0 %v92
    %178 = vmatpush.msra.mxu0 %v91
    %179 = vmatpush.msra.mxu0 %v90
    %180 = vmatpush.msra.mxu0 %v89
    %181 = vmatpush.msra.mxu0 %v88
    %182 = vmatpush.msra.mxu0 %v87
    %183 = vmatpush.msra.mxu0 %v86
    %184 = vmatpush.msra.mxu0 %v85
    %185 = vmatpush.msra.mxu0 %v84
    %186 = vmatpush.msra.mxu0 %v83
    %187 = vmatmul.f32.gmra.mxu0 %v169
    %v188 = vpop.f32.mrf.mxu0
    %v189 = vadd.f32 %v170, %v188
    %190 = vdwg.mxu0
    %v191 = vmax.f32 %v189, 0.0
    %v192 = vperm.slane %v117, 0
    %193 = vmatpush.msra.mxu0 %v114
    %194 = vmatpush.msra.mxu0 %v113
    %195 = vmatpush.msra.mxu0 %v112
    %196 = vmatpush.msra.mxu0 %v111
    %197 = vmatpush.msra.mxu0 %v110
    %198 = vmatpush.msra.mxu0 %v109
    %199 = vmatpush.msra.mxu0 %v108
    %200 = vmatpush.msra.mxu0 %v107
    %201 = vmatpush.msra.mxu0 %v106
    %202 = vmatpush.msra.mxu0 %v105
    %203 = vmatpush.msra.mxu0 %v104
    %204 = vmatpush.msra.mxu0 %v103
    %205 = vmatpush.msra.mxu0 %v102
    %206 = vmatpush.msra.mxu0 %v101
    %207 = vmatpush.msra.mxu0 %v100
    %208 = vmatpush.msra.mxu0 %v99
    %209 = vmatmul.f32.gmra.mxu0 %v191
    %v210 = vpop.f32.mrf.mxu0
    %v211 = vadd.f32 %v192, %v210
    %212 = vdwg.mxu0
    %v213 = vxor.u32 %v211, 2147483648
    %v214 = vmul.f32 %v213, 1.442695
    %v215 = vpow.pop %v214
    %v216 = vadd.f32 %v215, 1.0
    %v217 = vrcp.pop %v216
    %v218 = vmul.f32 %v216, %v217
    %v219 = vsub.f32 1.0, %v218
    %v220 = vmul.f32 %v217, %v219
    %v221 = vadd.f32 %v217, %v220
    %vm222 = vweird.f32 %v216
    %vm223 = vweird.f32 %v217
    %vm224 = vmor %vm222, %vm223
    %v225 = vsel %vm224, %v217, %v221
    %v226 = vand.u32 2147483647, %v216
    %vm227 = vcmp.eq.f32.partialorder %v226, 8.507059e+37
    %v228 = vand.u32 %v216, 2147483648
    %v229 = vor.u32 1.1754944e-38, %v228
    %v230 = vsel %vm227, %v229, %v225
    %v231 = vmul.f32 1.0, %v230
    %232 = vst [vmem:[#allocation10] sm:$0xff] %v231
    // Predicated region
    $region34: #{tpu_custom_call.1} parent=1 // pred_check
      _
    $region35: #{tpu_custom_call.1} parent=1 // pred_check_branch
      %234 = sbr.rel (0) target = $region37
    $region36: #{tpu_custom_call.1} parent=1 // pred_region
      %236 = vsyncadd [#allocation4], 0
      %s238 = sshll.u32 [#allocation10], 4
      %s239 = int_to_ptr.vmem [resolvable:$true] %s238
      %s240 = sshll.u32 %s4, 4
      %s241 = int_to_ptr.hbm [resolvable:$true] %s240
      %243 = dma.vmem_to_hbm [thread:$0]  %s239, 128, %s241, [#allocation4]
    $region37: #{tpu_custom_call.1} parent=1 // pred_fallthru
      _
    // Predicated region
    $region38: #{tpu_custom_call.1} parent=1 // pred_check
      _
    $region39: #{tpu_custom_call.1} parent=1 // pred_check_branch
      %245 = sbr.rel (0) target = $region41
    $region40: #{tpu_custom_call.1} parent=1 // pred_region
      %247 = dma.done [#allocation4], 128
    $region41: #{tpu_custom_call.1} parent=1 // pred_fallthru
      _
    %248 = vsyncpa [#allocation3], 1
    %249 = vsyncpa [#allocation6], 1
    %250 = vsyncpa [#allocation9], 1
    %251 = vsyncpa [#allocation4], 1

</llo_original>
